<compile_context>
chip_gen: v5e
topology: v5e:2x2
jax: 0.10.0
libtpu: 0.0.40
codegen_flags: <defaults>
</compile_context>

<pallas_src>
import functools
import random

import jax
import jax.numpy as jnp
import numpy as np
from jax.experimental import pallas as pl
from jax.experimental.pallas import tpu as pltpu


def _coteaching_kernel(x_ref, labels_ref, o_ref, *,
                       group, mask_group, rem_num, shift):
    # x_ref: (C, B) f32, batch on lanes.  labels_ref: (G, B) i32.
    # o_ref: (1, 1) f32 in SMEM.
    B = x_ref.shape[1]

    # ---- per-group cross entropy (reduction='none'); results are (1, B) ----
    lces = []
    now = 0
    for gi, g in enumerate(group):
        if not mask_group[gi]:
            xi = x_ref[now:now + g, :]                            # (g, B) f32
            m = jnp.max(xi, axis=0, keepdims=True)                # (1, B)
            lse = m + jnp.log(jnp.sum(jnp.exp(xi - m), axis=0, keepdims=True))
            lab = labels_ref[gi:gi + 1, :]                        # (1, B) i32
            rows = jax.lax.broadcasted_iota(jnp.int32, (g, B), 0)
            lab_logit = jnp.sum(jnp.where(rows == lab, xi, 0.0),
                                axis=0, keepdims=True)            # (1, B)
            lces.append(lse - lab_logit)                          # (1, B) CE per sample
        now += g

    n_active = len(lces)

    # ---- stable ascending rank of each group's CE (== argsort position) ----
    # rank[b] = #{b' : lce[b'] < lce[b]} + #{b' < b : lce[b'] == lce[b]}
    # Rows = candidate b' (sublanes), cols = query b (lanes): the rank sum is
    # a sublane reduction and the mask comes out lane-dense as (1, B).
    ridx = jax.lax.broadcasted_iota(jnp.int32, (B, B), 0)         # b'
    cidx = jax.lax.broadcasted_iota(jnp.int32, (B, B), 1)         # b
    tri = ridx < cidx                                             # hoisted tiebreak
    rem_f = jnp.float32(rem_num)

    masks = []
    for lce in lces:
        lce_q = lce                                               # (1, B): query b
        lce_o = jnp.transpose(lce)                                # (B, 1): other b'
        keep = (lce_o < lce_q) | ((lce_o == lce_q) & tri)         # (B, B) bool
        rank = jnp.sum(jnp.where(keep, 1.0, 0.0),
                       axis=0, keepdims=True)                     # (1, B) f32
        masks.append((rank < rem_f).astype(jnp.float32))          # keep rem_num smallest

    # ---- fused co-teaching selection: one weighted sum, one reduction ------
    w = jnp.zeros((1, B), jnp.float32)
    for i in range(n_active):
        w = w + lces[i] * masks[(i + shift) % n_active]
    o_ref[0, 0] = jnp.sum(w) * jnp.float32(1.0 / rem_num)


def mul_ce_in_coteaching_loss(x, labels, *, group=(2, 3, 3, 4),
                              noise_rate=0.1, shift=0, mask_group=None):
    """x: (B, sum(group)) f32 logits; labels: (B, len(group)) int32."""
    if mask_group is None:
        mask_group = [False] * len(group)
    B = x.shape[0]
    rem_num = int(B * (1.0 - noise_rate))
    if rem_num < 1:
        raise ValueError(
            "rem_num = int(B*(1-noise_rate)) must be >= 1 "
            f"(got B={B}, noise_rate={noise_rate})")

    kernel = functools.partial(_coteaching_kernel, group=tuple(group),
                               mask_group=tuple(mask_group),
                               rem_num=rem_num, shift=int(shift))

    # Lane-dense layout: batch on lanes (transpose done in the wrapper).
    x_t = jnp.transpose(x)              # (C, B)
    labels_t = jnp.transpose(labels)    # (G, B)

    out = pl.pallas_call(
        kernel,
        out_shape=jax.ShapeDtypeStruct((1, 1), jnp.float32),
        in_specs=[pl.BlockSpec(memory_space=pltpu.MemorySpace.VMEM),
                  pl.BlockSpec(memory_space=pltpu.MemorySpace.VMEM)],
        out_specs=pl.BlockSpec(memory_space=pltpu.MemorySpace.SMEM),
    )(x_t, labels_t)
    return out[0, 0]


def _reference(x, labels, group, noise_rate, shift):
    """Pure-JAX reference mirroring the PyTorch forward (oe_scale=None)."""
    B = x.shape[0]
    lces, now = [], 0
    for i, g in enumerate(group):
        xi = x[:, now:now + g]
        lse = jax.scipy.special.logsumexp(xi, axis=1)
        lab = jnp.take_along_axis(xi, labels[:, i:i + 1], axis=1)[:, 0]
        lces.append(lse - lab)
        now += g
    rem_num = int(B * (1.0 - noise_rate))
    idxs = [jnp.argsort(l) for l in lces]
    loss = jnp.float32(0.0)
    for i in range(len(lces)):
        loss = loss + lces[i][idxs[(i + shift) % len(lces)][:rem_num]].mean()
    return loss


if __name__ == "__main__":
    group = (2, 3, 3, 4)
    noise_rate = 0.1
    B = 8
    C = sum(group)                                  # 12

    key = jax.random.PRNGKey(0)
    kx, *klabs = jax.random.split(key, 1 + len(group))
    x = jax.random.normal(kx, (B, C), dtype=jnp.float32)
    labels = jnp.stack(
        [jax.random.randint(klabs[i], (B,), 0, group[i], dtype=jnp.int32)
         for i in range(len(group))], axis=1)       # (B, G) int32

    # deterministic stand-in for `random.randint(0, len(Lce)-1)` in forward()
    shift = random.Random(0).randint(0, len(group) - 1)

    loss = mul_ce_in_coteaching_loss(
        x, labels, group=group, noise_rate=noise_rate, shift=shift)
    loss = jax.block_until_ready(loss)

    ref = jax.block_until_ready(_reference(x, labels, group, noise_rate, shift))
    np.testing.assert_allclose(np.asarray(loss), np.asarray(ref),
                               rtol=1e-5, atol=1e-5)

    print("KERNEL_OK")
</pallas_src>

<mosaic_0001>
module attributes {stable_mosaic.version = 11 : i64} {
  func.func @_coteaching_kernel(%arg0: memref<12x8xf32, #tpu.memory_space<vmem>>, %arg1: memref<4x8xi32, #tpu.memory_space<vmem>>, %arg2: memref<1x1xf32, #tpu.memory_space<smem>>) attributes {dimension_semantics = [], scalar_prefetch = 0 : i64, scratch_operands = 0 : i64, tpu.core_type = #tpu.core_type<tc>} {
    %c0 = arith.constant 0 : index
    %c0_0 = arith.constant 0 : index
    %0 = vector.load %arg0[%c0, %c0_0] : memref<12x8xf32, #tpu.memory_space<vmem>>, vector<2x8xf32>
    %cst = arith.constant dense<0xFF800000> : vector<8xf32>
    %1 = vector.multi_reduction <maximumf>, %0, %cst [0] : vector<2x8xf32> to vector<8xf32>
    %2 = vector.shape_cast %1 : vector<8xf32> to vector<1x8xf32>
    %3 = vector.broadcast %2 : vector<1x8xf32> to vector<2x8xf32>
    %4 = arith.subf %0, %3 : vector<2x8xf32>
    %5 = math.exp %4 : vector<2x8xf32>
    %cst_1 = arith.constant dense<0.000000e+00> : vector<8xf32>
    %6 = vector.multi_reduction <add>, %5, %cst_1 [0] : vector<2x8xf32> to vector<8xf32>
    %7 = vector.shape_cast %6 : vector<8xf32> to vector<1x8xf32>
    %8 = math.log %7 : vector<1x8xf32>
    %9 = arith.addf %2, %8 : vector<1x8xf32>
    %c0_2 = arith.constant 0 : index
    %c0_3 = arith.constant 0 : index
    %10 = vector.load %arg1[%c0_2, %c0_3] : memref<4x8xi32, #tpu.memory_space<vmem>>, vector<1x8xi32>
    %11 = tpu.iota {dimensions = array<i32: 0>} : vector<2x8xi32>
    %12 = vector.broadcast %10 : vector<1x8xi32> to vector<2x8xi32>
    %13 = arith.cmpi eq, %11, %12 : vector<2x8xi32>
    %cst_4 = arith.constant 0.000000e+00 : f32
    %14 = vector.broadcast %cst_4 : f32 to vector<2x8xf32>
    %15 = arith.select %13, %0, %14 : vector<2x8xi1>, vector<2x8xf32>
    %cst_5 = arith.constant dense<0.000000e+00> : vector<8xf32>
    %16 = vector.multi_reduction <add>, %15, %cst_5 [0] : vector<2x8xf32> to vector<8xf32>
    %17 = vector.shape_cast %16 : vector<8xf32> to vector<1x8xf32>
    %18 = arith.subf %9, %17 : vector<1x8xf32>
    %c2 = arith.constant 2 : index
    %c0_6 = arith.constant 0 : index
    %19 = vector.load %arg0[%c2, %c0_6] : memref<12x8xf32, #tpu.memory_space<vmem>>, vector<3x8xf32>
    %cst_7 = arith.constant dense<0xFF800000> : vector<8xf32>
    %20 = vector.multi_reduction <maximumf>, %19, %cst_7 [0] : vector<3x8xf32> to vector<8xf32>
    %21 = vector.shape_cast %20 : vector<8xf32> to vector<1x8xf32>
    %22 = vector.broadcast %21 : vector<1x8xf32> to vector<3x8xf32>
    %23 = arith.subf %19, %22 : vector<3x8xf32>
    %24 = math.exp %23 : vector<3x8xf32>
    %cst_8 = arith.constant dense<0.000000e+00> : vector<8xf32>
    %25 = vector.multi_reduction <add>, %24, %cst_8 [0] : vector<3x8xf32> to vector<8xf32>
    %26 = vector.shape_cast %25 : vector<8xf32> to vector<1x8xf32>
    %27 = math.log %26 : vector<1x8xf32>
    %28 = arith.addf %21, %27 : vector<1x8xf32>
    %c1 = arith.constant 1 : index
    %c0_9 = arith.constant 0 : index
    %29 = vector.load %arg1[%c1, %c0_9] : memref<4x8xi32, #tpu.memory_space<vmem>>, vector<1x8xi32>
    %30 = tpu.iota {dimensions = array<i32: 0>} : vector<3x8xi32>
    %31 = vector.broadcast %29 : vector<1x8xi32> to vector<3x8xi32>
    %32 = arith.cmpi eq, %30, %31 : vector<3x8xi32>
    %cst_10 = arith.constant 0.000000e+00 : f32
    %33 = vector.broadcast %cst_10 : f32 to vector<3x8xf32>
    %34 = arith.select %32, %19, %33 : vector<3x8xi1>, vector<3x8xf32>
    %cst_11 = arith.constant dense<0.000000e+00> : vector<8xf32>
    %35 = vector.multi_reduction <add>, %34, %cst_11 [0] : vector<3x8xf32> to vector<8xf32>
    %36 = vector.shape_cast %35 : vector<8xf32> to vector<1x8xf32>
    %37 = arith.subf %28, %36 : vector<1x8xf32>
    %c5 = arith.constant 5 : index
    %c0_12 = arith.constant 0 : index
    %38 = vector.load %arg0[%c5, %c0_12] : memref<12x8xf32, #tpu.memory_space<vmem>>, vector<3x8xf32>
    %cst_13 = arith.constant dense<0xFF800000> : vector<8xf32>
    %39 = vector.multi_reduction <maximumf>, %38, %cst_13 [0] : vector<3x8xf32> to vector<8xf32>
    %40 = vector.shape_cast %39 : vector<8xf32> to vector<1x8xf32>
    %41 = vector.broadcast %40 : vector<1x8xf32> to vector<3x8xf32>
    %42 = arith.subf %38, %41 : vector<3x8xf32>
    %43 = math.exp %42 : vector<3x8xf32>
    %cst_14 = arith.constant dense<0.000000e+00> : vector<8xf32>
    %44 = vector.multi_reduction <add>, %43, %cst_14 [0] : vector<3x8xf32> to vector<8xf32>
    %45 = vector.shape_cast %44 : vector<8xf32> to vector<1x8xf32>
    %46 = math.log %45 : vector<1x8xf32>
    %47 = arith.addf %40, %46 : vector<1x8xf32>
    %c2_15 = arith.constant 2 : index
    %c0_16 = arith.constant 0 : index
    %48 = vector.load %arg1[%c2_15, %c0_16] : memref<4x8xi32, #tpu.memory_space<vmem>>, vector<1x8xi32>
    %49 = tpu.iota {dimensions = array<i32: 0>} : vector<3x8xi32>
    %50 = vector.broadcast %48 : vector<1x8xi32> to vector<3x8xi32>
    %51 = arith.cmpi eq, %49, %50 : vector<3x8xi32>
    %cst_17 = arith.constant 0.000000e+00 : f32
    %52 = vector.broadcast %cst_17 : f32 to vector<3x8xf32>
    %53 = arith.select %51, %38, %52 : vector<3x8xi1>, vector<3x8xf32>
    %cst_18 = arith.constant dense<0.000000e+00> : vector<8xf32>
    %54 = vector.multi_reduction <add>, %53, %cst_18 [0] : vector<3x8xf32> to vector<8xf32>
    %55 = vector.shape_cast %54 : vector<8xf32> to vector<1x8xf32>
    %56 = arith.subf %47, %55 : vector<1x8xf32>
    %c8 = arith.constant 8 : index
    %c0_19 = arith.constant 0 : index
    %57 = vector.load %arg0[%c8, %c0_19] : memref<12x8xf32, #tpu.memory_space<vmem>>, vector<4x8xf32>
    %cst_20 = arith.constant dense<0xFF800000> : vector<8xf32>
    %58 = vector.multi_reduction <maximumf>, %57, %cst_20 [0] : vector<4x8xf32> to vector<8xf32>
    %59 = vector.shape_cast %58 : vector<8xf32> to vector<1x8xf32>
    %60 = vector.broadcast %59 : vector<1x8xf32> to vector<4x8xf32>
    %61 = arith.subf %57, %60 : vector<4x8xf32>
    %62 = math.exp %61 : vector<4x8xf32>
    %cst_21 = arith.constant dense<0.000000e+00> : vector<8xf32>
    %63 = vector.multi_reduction <add>, %62, %cst_21 [0] : vector<4x8xf32> to vector<8xf32>
    %64 = vector.shape_cast %63 : vector<8xf32> to vector<1x8xf32>
    %65 = math.log %64 : vector<1x8xf32>
    %66 = arith.addf %59, %65 : vector<1x8xf32>
    %c3 = arith.constant 3 : index
    %c0_22 = arith.constant 0 : index
    %67 = vector.load %arg1[%c3, %c0_22] : memref<4x8xi32, #tpu.memory_space<vmem>>, vector<1x8xi32>
    %68 = tpu.iota {dimensions = array<i32: 0>} : vector<4x8xi32>
    %69 = vector.broadcast %67 : vector<1x8xi32> to vector<4x8xi32>
    %70 = arith.cmpi eq, %68, %69 : vector<4x8xi32>
    %cst_23 = arith.constant 0.000000e+00 : f32
    %71 = vector.broadcast %cst_23 : f32 to vector<4x8xf32>
    %72 = arith.select %70, %57, %71 : vector<4x8xi1>, vector<4x8xf32>
    %cst_24 = arith.constant dense<0.000000e+00> : vector<8xf32>
    %73 = vector.multi_reduction <add>, %72, %cst_24 [0] : vector<4x8xf32> to vector<8xf32>
    %74 = vector.shape_cast %73 : vector<8xf32> to vector<1x8xf32>
    %75 = arith.subf %66, %74 : vector<1x8xf32>
    %76 = tpu.iota {dimensions = array<i32: 0>} : vector<8x8xi32>
    %77 = tpu.iota {dimensions = array<i32: 1>} : vector<8x8xi32>
    %78 = arith.cmpi slt, %76, %77 : vector<8x8xi32>
    %79 = tpu.transpose %18, [1, 0] : vector<1x8xf32> -> vector<8x1xf32>
    %80 = vector.broadcast %79 : vector<8x1xf32> to vector<8x8xf32>
    %81 = vector.broadcast %18 : vector<1x8xf32> to vector<8x8xf32>
    %82 = arith.cmpf olt, %80, %81 : vector<8x8xf32>
    %83 = vector.broadcast %79 : vector<8x1xf32> to vector<8x8xf32>
    %84 = vector.broadcast %18 : vector<1x8xf32> to vector<8x8xf32>
    %85 = arith.cmpf oeq, %83, %84 : vector<8x8xf32>
    %86 = arith.andi %85, %78 : vector<8x8xi1>
    %87 = arith.ori %82, %86 : vector<8x8xi1>
    %cst_25 = arith.constant 1.000000e+00 : f32
    %cst_26 = arith.constant 0.000000e+00 : f32
    %88 = vector.broadcast %cst_25 : f32 to vector<8x8xf32>
    %89 = vector.broadcast %cst_26 : f32 to vector<8x8xf32>
    %90 = arith.select %87, %88, %89 : vector<8x8xi1>, vector<8x8xf32>
    %cst_27 = arith.constant dense<0.000000e+00> : vector<8xf32>
    %91 = vector.multi_reduction <add>, %90, %cst_27 [0] : vector<8x8xf32> to vector<8xf32>
    %92 = vector.shape_cast %91 : vector<8xf32> to vector<1x8xf32>
    %cst_28 = arith.constant 7.000000e+00 : f32
    %93 = vector.broadcast %cst_28 : f32 to vector<1x8xf32>
    %94 = arith.cmpf olt, %92, %93 : vector<1x8xf32>
    %95 = arith.extui %94 : vector<1x8xi1> to vector<1x8xi32>
    %96 = arith.sitofp %95 : vector<1x8xi32> to vector<1x8xf32>
    %97 = tpu.transpose %37, [1, 0] : vector<1x8xf32> -> vector<8x1xf32>
    %98 = vector.broadcast %97 : vector<8x1xf32> to vector<8x8xf32>
    %99 = vector.broadcast %37 : vector<1x8xf32> to vector<8x8xf32>
    %100 = arith.cmpf olt, %98, %99 : vector<8x8xf32>
    %101 = vector.broadcast %97 : vector<8x1xf32> to vector<8x8xf32>
    %102 = vector.broadcast %37 : vector<1x8xf32> to vector<8x8xf32>
    %103 = arith.cmpf oeq, %101, %102 : vector<8x8xf32>
    %104 = arith.andi %103, %78 : vector<8x8xi1>
    %105 = arith.ori %100, %104 : vector<8x8xi1>
    %cst_29 = arith.constant 1.000000e+00 : f32
    %cst_30 = arith.constant 0.000000e+00 : f32
    %106 = vector.broadcast %cst_29 : f32 to vector<8x8xf32>
    %107 = vector.broadcast %cst_30 : f32 to vector<8x8xf32>
    %108 = arith.select %105, %106, %107 : vector<8x8xi1>, vector<8x8xf32>
    %cst_31 = arith.constant dense<0.000000e+00> : vector<8xf32>
    %109 = vector.multi_reduction <add>, %108, %cst_31 [0] : vector<8x8xf32> to vector<8xf32>
    %110 = vector.shape_cast %109 : vector<8xf32> to vector<1x8xf32>
    %cst_32 = arith.constant 7.000000e+00 : f32
    %111 = vector.broadcast %cst_32 : f32 to vector<1x8xf32>
    %112 = arith.cmpf olt, %110, %111 : vector<1x8xf32>
    %113 = arith.extui %112 : vector<1x8xi1> to vector<1x8xi32>
    %114 = arith.sitofp %113 : vector<1x8xi32> to vector<1x8xf32>
    %115 = tpu.transpose %56, [1, 0] : vector<1x8xf32> -> vector<8x1xf32>
    %116 = vector.broadcast %115 : vector<8x1xf32> to vector<8x8xf32>
    %117 = vector.broadcast %56 : vector<1x8xf32> to vector<8x8xf32>
    %118 = arith.cmpf olt, %116, %117 : vector<8x8xf32>
    %119 = vector.broadcast %115 : vector<8x1xf32> to vector<8x8xf32>
    %120 = vector.broadcast %56 : vector<1x8xf32> to vector<8x8xf32>
    %121 = arith.cmpf oeq, %119, %120 : vector<8x8xf32>
    %122 = arith.andi %121, %78 : vector<8x8xi1>
    %123 = arith.ori %118, %122 : vector<8x8xi1>
    %cst_33 = arith.constant 1.000000e+00 : f32
    %cst_34 = arith.constant 0.000000e+00 : f32
    %124 = vector.broadcast %cst_33 : f32 to vector<8x8xf32>
    %125 = vector.broadcast %cst_34 : f32 to vector<8x8xf32>
    %126 = arith.select %123, %124, %125 : vector<8x8xi1>, vector<8x8xf32>
    %cst_35 = arith.constant dense<0.000000e+00> : vector<8xf32>
    %127 = vector.multi_reduction <add>, %126, %cst_35 [0] : vector<8x8xf32> to vector<8xf32>
    %128 = vector.shape_cast %127 : vector<8xf32> to vector<1x8xf32>
    %cst_36 = arith.constant 7.000000e+00 : f32
    %129 = vector.broadcast %cst_36 : f32 to vector<1x8xf32>
    %130 = arith.cmpf olt, %128, %129 : vector<1x8xf32>
    %131 = arith.extui %130 : vector<1x8xi1> to vector<1x8xi32>
    %132 = arith.sitofp %131 : vector<1x8xi32> to vector<1x8xf32>
    %133 = tpu.transpose %75, [1, 0] : vector<1x8xf32> -> vector<8x1xf32>
    %134 = vector.broadcast %133 : vector<8x1xf32> to vector<8x8xf32>
    %135 = vector.broadcast %75 : vector<1x8xf32> to vector<8x8xf32>
    %136 = arith.cmpf olt, %134, %135 : vector<8x8xf32>
    %137 = vector.broadcast %133 : vector<8x1xf32> to vector<8x8xf32>
    %138 = vector.broadcast %75 : vector<1x8xf32> to vector<8x8xf32>
    %139 = arith.cmpf oeq, %137, %138 : vector<8x8xf32>
    %140 = arith.andi %139, %78 : vector<8x8xi1>
    %141 = arith.ori %136, %140 : vector<8x8xi1>
    %cst_37 = arith.constant 1.000000e+00 : f32
    %cst_38 = arith.constant 0.000000e+00 : f32
    %142 = vector.broadcast %cst_37 : f32 to vector<8x8xf32>
    %143 = vector.broadcast %cst_38 : f32 to vector<8x8xf32>
    %144 = arith.select %141, %142, %143 : vector<8x8xi1>, vector<8x8xf32>
    %cst_39 = arith.constant dense<0.000000e+00> : vector<8xf32>
    %145 = vector.multi_reduction <add>, %144, %cst_39 [0] : vector<8x8xf32> to vector<8xf32>
    %146 = vector.shape_cast %145 : vector<8xf32> to vector<1x8xf32>
    %cst_40 = arith.constant 7.000000e+00 : f32
    %147 = vector.broadcast %cst_40 : f32 to vector<1x8xf32>
    %148 = arith.cmpf olt, %146, %147 : vector<1x8xf32>
    %149 = arith.extui %148 : vector<1x8xi1> to vector<1x8xi32>
    %150 = arith.sitofp %149 : vector<1x8xi32> to vector<1x8xf32>
    %cst_41 = arith.constant 0.000000e+00 : f32
    %151 = vector.broadcast %cst_41 : f32 to vector<1x8xf32>
    %152 = arith.mulf %18, %150 : vector<1x8xf32>
    %153 = arith.addf %151, %152 : vector<1x8xf32>
    %154 = arith.mulf %37, %96 : vector<1x8xf32>
    %155 = arith.addf %153, %154 : vector<1x8xf32>
    %156 = arith.mulf %56, %114 : vector<1x8xf32>
    %157 = arith.addf %155, %156 : vector<1x8xf32>
    %158 = arith.mulf %75, %132 : vector<1x8xf32>
    %159 = arith.addf %157, %158 : vector<1x8xf32>
    %160 = vector.shape_cast %159 : vector<1x8xf32> to vector<1x1x8xf32>
    %cst_42 = arith.constant dense<0.000000e+00> : vector<1xf32>
    %161 = vector.multi_reduction <add>, %160, %cst_42 [1, 2] : vector<1x1x8xf32> to vector<1xf32>
    %162 = vector.shape_cast %161 : vector<1xf32> to vector<1x1x1xf32>
    %163 = vector.extract %162[0, 0, 0] : f32 from vector<1x1x1xf32>
    %cst_43 = arith.constant 0.142857149 : f32
    %164 = arith.mulf %163, %cst_43 : f32
    %c0_44 = arith.constant 0 : index
    %c0_45 = arith.constant 0 : index
    %165 = memref.load %arg2[%c0_44, %c0_45] : memref<1x1xf32, #tpu.memory_space<smem>>
    memref.store %164, %arg2[%c0_44, %c0_45] : memref<1x1xf32, #tpu.memory_space<smem>>
    return
  }
}

</mosaic_0001>

<llo_original>
// kernel: tpu_custom_call.1
$region0: #{tpu_custom_call.1}
  #allocation0 [shape = 'u32[]', space=smem, size = 0x4, offset = 0x4, fixed_abs, tag = 'smem constant byte address 0x4 - core index']
  #allocation1 [shape = 'u32[72,128]{1,0:T(1,128)}', space=vmem, size = 0x9000, scoped, tag = 'internal scratch']
  %s0 = inlined_call_operand.vmem [shape: f32[12,8], index: 0, kind: input, shape index: {}]
  %s1 = inlined_call_operand.vmem [shape: s32[4,8], index: 1, kind: input, shape index: {}]
  %s2 = inlined_call_operand.hbm [shape: f32[1,1], index: 2, kind: output, shape index: {}]
  %s3 = sld [smem:[#allocation0]]
  $region18: #{tpu_custom_call.1} parent=0
    _
  %s5 = ssub.s32 1, %s3
  %s6 = scalar_select 0, %s5, %s3
  $region1: #{tpu_custom_call.1} parent=0
    #allocation2 [shape = 'u8[512]{0}', space=smem, size = 0x200, scoped, tag = 'output window, operand 0, single buffered']
    #allocation3 [shape = 's32[1]{0}', space=sflag, size = 0x4, scoped, tag = 'scoped memory for tpu_custom_call.1']
    %7 = vsyncpa [#allocation3], 0
    // Predicated region
    $region2: #{tpu_custom_call.1} parent=1 // pred_check
      _
    $region3: #{tpu_custom_call.1} parent=1 // pred_check_branch
      %9 = sbr.rel (0) target = $region5
    $region4: #{tpu_custom_call.1} parent=1 // pred_region
      _
    $region5: #{tpu_custom_call.1} parent=1 // pred_fallthru
      _
    // Predicated region
    $region6: #{tpu_custom_call.1} parent=1 // pred_check
      _
    $region7: #{tpu_custom_call.1} parent=1 // pred_check_branch
      %11 = sbr.rel (0) target = $region9
    $region8: #{tpu_custom_call.1} parent=1 // pred_region
      _
    $region9: #{tpu_custom_call.1} parent=1 // pred_fallthru
      _
    %v12 = vld [vmem:[%s0] sm:$0x3]
    %vm13 = vcmask 58368
    %v14 = vsel %vm13, %v12, -inf
    %v15 = vrot.slane %v14, 4
    %v16 = vmax.f32 %v14, %v15
    %v17 = vrot.slane %v16, 2
    %v18 = vmax.f32 %v16, %v17
    %v19 = vrot.slane %v18, 1
    %v20 = vmax.f32 %v18, %v19
    %v21 = vsub.f32 %v12, %v20
    %v22 = vmul.f32 %v21, 1.442695
    %v23 = vpow.pop %v22
    %v24 = vsel %vm13, %v23, 0.0
    %v25 = vrot.slane %v24, 4
    %v26 = vadd.f32 %v24, %v25
    %v27 = vrot.slane %v26, 2
    %v28 = vadd.f32 %v26, %v27
    %v29 = vrot.slane %v28, 1
    %v30 = vadd.f32 %v28, %v29
    %v31 = vlog2.pop %v30
    %v32 = vmul.f32 %v31, 0.6931472
    %v33 = vadd.f32 %v20, %v32
    %v34 = vld [vmem:[%s1] sm:$0x1]
    %v35 = vlaneseq
    %v36 = vshrl.u32 %v35, 7
    %v37 = vperm.slane %v34, 0
    %vm38 = vcmp.eq.s32.totalorder %v36, %v37
    %v39 = vsel %vm38, %v12, 0.0
    %v40 = vsel %vm13, %v39, 0.0
    %v41 = vrot.slane %v40, 4
    %v42 = vadd.f32 %v40, %v41
    %v43 = vrot.slane %v42, 2
    %v44 = vadd.f32 %v42, %v43
    %v45 = vrot.slane %v44, 1
    %v46 = vadd.f32 %v44, %v45
    %v47 = vsub.f32 %v33, %v46
    %v48 = vld [vmem:[%s0 + $0x2] sm:$0x7]
    %vm49 = vcmask 59392
    %v50 = vsel %vm49, %v48, -inf
    %v51 = vrot.slane %v50, 4
    %v52 = vmax.f32 %v50, %v51
    %v53 = vrot.slane %v52, 2
    %v54 = vmax.f32 %v52, %v53
    %v55 = vrot.slane %v54, 1
    %v56 = vmax.f32 %v54, %v55
    %v57 = vsub.f32 %v48, %v56
    %v58 = vmul.f32 %v57, 1.442695
    %v59 = vpow.pop %v58
    %v60 = vsel %vm49, %v59, 0.0
    %v61 = vrot.slane %v60, 4
    %v62 = vadd.f32 %v60, %v61
    %v63 = vrot.slane %v62, 2
    %v64 = vadd.f32 %v62, %v63
    %v65 = vrot.slane %v64, 1
    %v66 = vadd.f32 %v64, %v65
    %v67 = vlog2.pop %v66
    %v68 = vmul.f32 %v67, 0.6931472
    %v69 = vadd.f32 %v56, %v68
    %v70 = vld [vmem:[%s1 + $0x1] sm:$0x1]
    %v71 = vperm.slane %v70, 0
    %vm72 = vcmp.eq.s32.totalorder %v36, %v71
    %v73 = vsel %vm72, %v48, 0.0
    %v74 = vsel %vm49, %v73, 0.0
    %v75 = vrot.slane %v74, 4
    %v76 = vadd.f32 %v74, %v75
    %v77 = vrot.slane %v76, 2
    %v78 = vadd.f32 %v76, %v77
    %v79 = vrot.slane %v78, 1
    %v80 = vadd.f32 %v78, %v79
    %v81 = vsub.f32 %v69, %v80
    %v82 = vld [vmem:[%s0 + $0x5] sm:$0x7]
    %v83 = vsel %vm49, %v82, -inf
    %v84 = vrot.slane %v83, 4
    %v85 = vmax.f32 %v83, %v84
    %v86 = vrot.slane %v85, 2
    %v87 = vmax.f32 %v85, %v86
    %v88 = vrot.slane %v87, 1
    %v89 = vmax.f32 %v87, %v88
    %v90 = vsub.f32 %v82, %v89
    %v91 = vmul.f32 %v90, 1.442695
    %v92 = vpow.pop %v91
    %v93 = vsel %vm49, %v92, 0.0
    %v94 = vrot.slane %v93, 4
    %v95 = vadd.f32 %v93, %v94
    %v96 = vrot.slane %v95, 2
    %v97 = vadd.f32 %v95, %v96
    %v98 = vrot.slane %v97, 1
    %v99 = vadd.f32 %v97, %v98
    %v100 = vlog2.pop %v99
    %v101 = vmul.f32 %v100, 0.6931472
    %v102 = vadd.f32 %v89, %v101
    %v103 = vld [vmem:[%s1 + $0x2] sm:$0x1]
    %v104 = vperm.slane %v103, 0
    %vm105 = vcmp.eq.s32.totalorder %v36, %v104
    %v106 = vsel %vm105, %v82, 0.0
    %v107 = vsel %vm49, %v106, 0.0
    %v108 = vrot.slane %v107, 4
    %v109 = vadd.f32 %v107, %v108
    %v110 = vrot.slane %v109, 2
    %v111 = vadd.f32 %v109, %v110
    %v112 = vrot.slane %v111, 1
    %v113 = vadd.f32 %v111, %v112
    %v114 = vsub.f32 %v102, %v113
    %v115 = vld [vmem:[%s0 + $0x8] sm:$0xf]
    %vm116 = vcmask 60416
    %v117 = vsel %vm116, %v115, -inf
    %v118 = vrot.slane %v117, 4
    %v119 = vmax.f32 %v117, %v118
    %v120 = vrot.slane %v119, 2
    %v121 = vmax.f32 %v119, %v120
    %v122 = vrot.slane %v121, 1
    %v123 = vmax.f32 %v121, %v122
    %v124 = vsub.f32 %v115, %v123
    %v125 = vmul.f32 %v124, 1.442695
    %v126 = vpow.pop %v125
    %v127 = vsel %vm116, %v126, 0.0
    %v128 = vrot.slane %v127, 4
    %v129 = vadd.f32 %v127, %v128
    %v130 = vrot.slane %v129, 2
    %v131 = vadd.f32 %v129, %v130
    %v132 = vrot.slane %v131, 1
    %v133 = vadd.f32 %v131, %v132
    %v134 = vlog2.pop %v133
    %v135 = vmul.f32 %v134, 0.6931472
    %v136 = vadd.f32 %v123, %v135
    %v137 = vld [vmem:[%s1 + $0x3] sm:$0x1]
    %v138 = vperm.slane %v137, 0
    %vm139 = vcmp.eq.s32.totalorder %v36, %v138
    %v140 = vsel %vm139, %v115, 0.0
    %v141 = vsel %vm116, %v140, 0.0
    %v142 = vrot.slane %v141, 4
    %v143 = vadd.f32 %v141, %v142
    %v144 = vrot.slane %v143, 2
    %v145 = vadd.f32 %v143, %v144
    %v146 = vrot.slane %v145, 1
    %v147 = vadd.f32 %v145, %v146
    %v148 = vsub.f32 %v136, %v147
    %v149 = vlaneseq
    %v150 = vand.u32 %v149, 127
    %vm151 = vcmp.lt.s32.totalorder %v36, %v150
    %152 = vxpose.xlu0.b32.start [1/16] %v47, 128
    %153 = vxpose.xlu0.b32.cont [2/16] 0.0, 128
    %154 = vxpose.xlu0.b32.cont [3/16] 0.0, 128
    %155 = vxpose.xlu0.b32.cont [4/16] 0.0, 128
    %156 = vxpose.xlu0.b32.cont [5/16] 0.0, 128
    %157 = vxpose.xlu0.b32.cont [6/16] 0.0, 128
    %158 = vxpose.xlu0.b32.cont [7/16] 0.0, 128
    %159 = vxpose.xlu0.b32.cont [8/16] 0.0, 128
    %160 = vxpose.xlu0.b32.cont [9/16] 0.0, 128
    %161 = vxpose.xlu0.b32.cont [10/16] 0.0, 128
    %162 = vxpose.xlu0.b32.cont [11/16] 0.0, 128
    %163 = vxpose.xlu0.b32.cont [12/16] 0.0, 128
    %164 = vxpose.xlu0.b32.cont [13/16] 0.0, 128
    %165 = vxpose.xlu0.b32.cont [14/16] 0.0, 128
    %166 = vxpose.xlu0.b32.cont [15/16] 0.0, 128
    %167 = vxpose.xlu0.b32.end [16/16] 0.0, 128
    %v168 = vpop.trf.xlu0
    %v169 = vpop.trf.xlu0
    %v170 = vpop.trf.xlu0
    %v171 = vpop.trf.xlu0
    %v172 = vpop.trf.xlu0
    %v173 = vpop.trf.xlu0
    %v174 = vpop.trf.xlu0
    %v175 = vpop.trf.xlu0
    %v176 = vpop.trf.xlu0
    %v177 = vpop.trf.xlu0
    %v178 = vpop.trf.xlu0
    %v179 = vpop.trf.xlu0
    %v180 = vpop.trf.xlu0
    %v181 = vpop.trf.xlu0
    %v182 = vpop.trf.xlu0
    %v183 = vpop.trf.xlu0
    %185 = vset.pattern.permute.xlu0 0
    %186 = vperm.xlu0 %185, %v168
    %v187 = vpop.permute.xlu0 %186
    %vm189 = vcmp.lt.f32.partialorder %v187, %v47
    %vm190 = vcmp.eq.f32.partialorder %v187, %v47
    %vm191 = vmand %vm190, %vm151
    %vm192 = vmor %vm189, %vm191
    %v193 = vsel %vm192, 1.0, 0.0
    %vm194 = vcmask 64512
    %v195 = vsel %vm194, %v193, 0.0
    %v196 = vrot.slane %v195, 4
    %v197 = vadd.f32 %v195, %v196
    %v198 = vrot.slane %v197, 2
    %v199 = vadd.f32 %v197, %v198
    %v200 = vrot.slane %v199, 1
    %v201 = vadd.f32 %v199, %v200
    %vm202 = vcmp.lt.f32.partialorder %v201, 7.0
    %v203 = vsel %vm202, 1, 0
    %v204 = vcvt.s32.f32 %v203
    %205 = vxpose.xlu0.b32.start [1/16] %v81, 128
    %206 = vxpose.xlu0.b32.cont [2/16] 0.0, 128
    %207 = vxpose.xlu0.b32.cont [3/16] 0.0, 128
    %208 = vxpose.xlu0.b32.cont [4/16] 0.0, 128
    %209 = vxpose.xlu0.b32.cont [5/16] 0.0, 128
    %210 = vxpose.xlu0.b32.cont [6/16] 0.0, 128
    %211 = vxpose.xlu0.b32.cont [7/16] 0.0, 128
    %212 = vxpose.xlu0.b32.cont [8/16] 0.0, 128
    %213 = vxpose.xlu0.b32.cont [9/16] 0.0, 128
    %214 = vxpose.xlu0.b32.cont [10/16] 0.0, 128
    %215 = vxpose.xlu0.b32.cont [11/16] 0.0, 128
    %216 = vxpose.xlu0.b32.cont [12/16] 0.0, 128
    %217 = vxpose.xlu0.b32.cont [13/16] 0.0, 128
    %218 = vxpose.xlu0.b32.cont [14/16] 0.0, 128
    %219 = vxpose.xlu0.b32.cont [15/16] 0.0, 128
    %220 = vxpose.xlu0.b32.end [16/16] 0.0, 128
    %v221 = vpop.trf.xlu0
    %v222 = vpop.trf.xlu0
    %v223 = vpop.trf.xlu0
    %v224 = vpop.trf.xlu0
    %v225 = vpop.trf.xlu0
    %v226 = vpop.trf.xlu0
    %v227 = vpop.trf.xlu0
    %v228 = vpop.trf.xlu0
    %v229 = vpop.trf.xlu0
    %v230 = vpop.trf.xlu0
    %v231 = vpop.trf.xlu0
    %v232 = vpop.trf.xlu0
    %v233 = vpop.trf.xlu0
    %v234 = vpop.trf.xlu0
    %v235 = vpop.trf.xlu0
    %v236 = vpop.trf.xlu0
    %238 = vset.pattern.permute.xlu0 0
    %239 = vperm.xlu0 %238, %v221
    %v240 = vpop.permute.xlu0 %239
    %vm242 = vcmp.lt.f32.partialorder %v240, %v81
    %vm243 = vcmp.eq.f32.partialorder %v240, %v81
    %vm244 = vmand %vm243, %vm151
    %vm245 = vmor %vm242, %vm244
    %v246 = vsel %vm245, 1.0, 0.0
    %v247 = vsel %vm194, %v246, 0.0
    %v248 = vrot.slane %v247, 4
    %v249 = vadd.f32 %v247, %v248
    %v250 = vrot.slane %v249, 2
    %v251 = vadd.f32 %v249, %v250
    %v252 = vrot.slane %v251, 1
    %v253 = vadd.f32 %v251, %v252
    %vm254 = vcmp.lt.f32.partialorder %v253, 7.0
    %v255 = vsel %vm254, 1, 0
    %v256 = vcvt.s32.f32 %v255
    %257 = vxpose.xlu0.b32.start [1/16] %v114, 128
    %258 = vxpose.xlu0.b32.cont [2/16] 0.0, 128
    %259 = vxpose.xlu0.b32.cont [3/16] 0.0, 128
    %260 = vxpose.xlu0.b32.cont [4/16] 0.0, 128
    %261 = vxpose.xlu0.b32.cont [5/16] 0.0, 128
    %262 = vxpose.xlu0.b32.cont [6/16] 0.0, 128
    %263 = vxpose.xlu0.b32.cont [7/16] 0.0, 128
    %264 = vxpose.xlu0.b32.cont [8/16] 0.0, 128
    %265 = vxpose.xlu0.b32.cont [9/16] 0.0, 128
    %266 = vxpose.xlu0.b32.cont [10/16] 0.0, 128
    %267 = vxpose.xlu0.b32.cont [11/16] 0.0, 128
    %268 = vxpose.xlu0.b32.cont [12/16] 0.0, 128
    %269 = vxpose.xlu0.b32.cont [13/16] 0.0, 128
    %270 = vxpose.xlu0.b32.cont [14/16] 0.0, 128
    %271 = vxpose.xlu0.b32.cont [15/16] 0.0, 128
    %272 = vxpose.xlu0.b32.end [16/16] 0.0, 128
    %v273 = vpop.trf.xlu0
    %v274 = vpop.trf.xlu0
    %v275 = vpop.trf.xlu0
    %v276 = vpop.trf.xlu0
    %v277 = vpop.trf.xlu0
    %v278 = vpop.trf.xlu0
    %v279 = vpop.trf.xlu0
    %v280 = vpop.trf.xlu0
    %v281 = vpop.trf.xlu0
    %v282 = vpop.trf.xlu0
    %v283 = vpop.trf.xlu0
    %v284 = vpop.trf.xlu0
    %v285 = vpop.trf.xlu0
    %v286 = vpop.trf.xlu0
    %v287 = vpop.trf.xlu0
    %v288 = vpop.trf.xlu0
    %290 = vset.pattern.permute.xlu0 0
    %291 = vperm.xlu0 %290, %v273
    %v292 = vpop.permute.xlu0 %291
    %vm294 = vcmp.lt.f32.partialorder %v292, %v114
    %vm295 = vcmp.eq.f32.partialorder %v292, %v114
    %vm296 = vmand %vm295, %vm151
    %vm297 = vmor %vm294, %vm296
    %v298 = vsel %vm297, 1.0, 0.0
    %v299 = vsel %vm194, %v298, 0.0
    %v300 = vrot.slane %v299, 4
    %v301 = vadd.f32 %v299, %v300
    %v302 = vrot.slane %v301, 2
    %v303 = vadd.f32 %v301, %v302
    %v304 = vrot.slane %v303, 1
    %v305 = vadd.f32 %v303, %v304
    %vm306 = vcmp.lt.f32.partialorder %v305, 7.0
    %v307 = vsel %vm306, 1, 0
    %v308 = vcvt.s32.f32 %v307
    %309 = vxpose.xlu0.b32.start [1/16] %v148, 128
    %310 = vxpose.xlu0.b32.cont [2/16] 0.0, 128
    %311 = vxpose.xlu0.b32.cont [3/16] 0.0, 128
    %312 = vxpose.xlu0.b32.cont [4/16] 0.0, 128
    %313 = vxpose.xlu0.b32.cont [5/16] 0.0, 128
    %314 = vxpose.xlu0.b32.cont [6/16] 0.0, 128
    %315 = vxpose.xlu0.b32.cont [7/16] 0.0, 128
    %316 = vxpose.xlu0.b32.cont [8/16] 0.0, 128
    %317 = vxpose.xlu0.b32.cont [9/16] 0.0, 128
    %318 = vxpose.xlu0.b32.cont [10/16] 0.0, 128
    %319 = vxpose.xlu0.b32.cont [11/16] 0.0, 128
    %320 = vxpose.xlu0.b32.cont [12/16] 0.0, 128
    %321 = vxpose.xlu0.b32.cont [13/16] 0.0, 128
    %322 = vxpose.xlu0.b32.cont [14/16] 0.0, 128
    %323 = vxpose.xlu0.b32.cont [15/16] 0.0, 128
    %324 = vxpose.xlu0.b32.end [16/16] 0.0, 128
    %v325 = vpop.trf.xlu0
    %v326 = vpop.trf.xlu0
    %v327 = vpop.trf.xlu0
    %v328 = vpop.trf.xlu0
    %v329 = vpop.trf.xlu0
    %v330 = vpop.trf.xlu0
    %v331 = vpop.trf.xlu0
    %v332 = vpop.trf.xlu0
    %v333 = vpop.trf.xlu0
    %v334 = vpop.trf.xlu0
    %v335 = vpop.trf.xlu0
    %v336 = vpop.trf.xlu0
    %v337 = vpop.trf.xlu0
    %v338 = vpop.trf.xlu0
    %v339 = vpop.trf.xlu0
    %v340 = vpop.trf.xlu0
    %342 = vset.pattern.permute.xlu0 0
    %343 = vperm.xlu0 %342, %v325
    %v344 = vpop.permute.xlu0 %343
    %vm346 = vcmp.lt.f32.partialorder %v344, %v148
    %vm347 = vcmp.eq.f32.partialorder %v344, %v148
    %vm348 = vmand %vm347, %vm151
    %vm349 = vmor %vm346, %vm348
    %v350 = vsel %vm349, 1.0, 0.0
    %v351 = vsel %vm194, %v350, 0.0
    %v352 = vrot.slane %v351, 4
    %v353 = vadd.f32 %v351, %v352
    %v354 = vrot.slane %v353, 2
    %v355 = vadd.f32 %v353, %v354
    %v356 = vrot.slane %v355, 1
    %v357 = vadd.f32 %v355, %v356
    %vm358 = vcmp.lt.f32.partialorder %v357, 7.0
    %v359 = vsel %vm358, 1, 0
    %v360 = vcvt.s32.f32 %v359
    %v361 = vmul.f32 %v47, %v360
    %v362 = vadd.f32 %v361, 0.0
    %v363 = vmul.f32 %v81, %v204
    %v364 = vadd.f32 %v362, %v363
    %v365 = vmul.f32 %v114, %v256
    %v366 = vadd.f32 %v364, %v365
    %v367 = vmul.f32 %v148, %v308
    %v368 = vadd.f32 %v366, %v367
    %vm369 = vcmask 57344
    %v370 = vsel %vm369, %v368, 0.0
    %371 = vadd.xlane.f32.xlu0 %v370
    %v372 = vpop.xlane.xlu0 %371
    %v373 = vrot.slane %v372, 4
    %v374 = vadd.f32 %v372, %v373
    %v375 = vrot.slane %v374, 2
    %v376 = vadd.f32 %v374, %v375
    %v377 = vrot.slane %v376, 1
    %v378 = vadd.f32 %v376, %v377
    %s379 = vtos %v378
    %s380 = smul.f32 %s379, 0.14285715
    %s381 = scalar_lea.smem [#allocation2], 0
    %382 = sst [smem:[%s381]] %s380
    // Predicated region
    $region10: #{tpu_custom_call.1} parent=1 // pred_check
      _
    $region11: #{tpu_custom_call.1} parent=1 // pred_check_branch
      %384 = sbr.rel (0) target = $region13
    $region12: #{tpu_custom_call.1} parent=1 // pred_region
      %386 = vsyncadd [#allocation3], 0
      %s388 = sshll.u32 %s2, 4
      %s389 = int_to_ptr.hbm [resolvable:$true] %s388
      %391 = dma.smem_to_hbm [#allocation2], 16, %s389, [#allocation3]
    $region13: #{tpu_custom_call.1} parent=1 // pred_fallthru
      _
    // Predicated region
    $region14: #{tpu_custom_call.1} parent=1 // pred_check
      _
    $region15: #{tpu_custom_call.1} parent=1 // pred_check_branch
      %393 = sbr.rel (0) target = $region17
    $region16: #{tpu_custom_call.1} parent=1 // pred_region
      %395 = dma.done [#allocation3], 16
    $region17: #{tpu_custom_call.1} parent=1 // pred_fallthru
      _
    %396 = sfence
    %397 = vsyncpa [#allocation3], 1

</llo_original>
